<compile_context>
chip_gen: v6e
topology: v6e:2x2x1
jax: 0.10.0
libtpu: 0.0.40
codegen_flags: <defaults>
</compile_context>

<pallas_src>
import functools

import jax
import jax.numpy as jnp
import numpy as np
from jax import lax
from jax.experimental import pallas as pl
from jax.experimental.pallas import tpu as pltpu


# ----------------------------------------------------------------------------
# Pallas kernel: fused conv-as-matmul + bias, output already in (N, L) layout
# ----------------------------------------------------------------------------
def _patch_embed_kernel(x_ref, w_ref, b_ref, o_ref):
    """x_ref: (bt, K, L) bf16; w_ref: (tn, K) bf16; b_ref: (tn, 1) f32;
    o_ref: (bt, tn, L).  o[i] = w @ x[i] + b  (f32 accumulation on the MXU)."""
    w = w_ref[...]
    bias = b_ref[...]
    for i in range(x_ref.shape[0]):           # static, small batch tile
        acc = jnp.dot(w, x_ref[i], preferred_element_type=jnp.float32)   # (tn, L)
        o_ref[i] = (acc + bias).astype(o_ref.dtype)


# ----------------------------------------------------------------------------
# Wrapper helpers
# ----------------------------------------------------------------------------
def _to_2tuple(v):
    return tuple(v) if isinstance(v, (tuple, list)) else (v, v)


def _extract_patches_T(x, patch_size, stride, padding):
    """x: (B, C, H, W) -> transposed patches (B, K, L).

    K = C*kh*kw ordered (C, kh, kw)  (matches torch Conv2d weight.reshape(N, K)),
    L = oh*ow in conv raster order.
    """
    B, C, H, W = x.shape
    kh, kw = patch_size
    sh, sw = stride
    ph, pw = padding
    oh = (H + 2 * ph - kh) // sh + 1
    ow = (W + 2 * pw - kw) // sw + 1
    K = C * kh * kw
    if (kh, kw) == (sh, sw) and ph == 0 and pw == 0 and H % kh == 0 and W % kw == 0:
        # Canonical non-overlapping PatchEmbed: pure reshape + one transpose.
        p = x.reshape(B, C, oh, kh, ow, kw)
        p = jnp.transpose(p, (0, 1, 3, 5, 2, 4))        # (B, C, kh, kw, oh, ow)
    else:
        # General (overlapping / padded) case: patch-extraction primitive.  Its
        # NCHW output is already (B, K, oh, ow) -> no extra transpose needed.
        p = lax.conv_general_dilated_patches(
            x, filter_shape=(kh, kw), window_strides=(sh, sw),
            padding=((ph, ph), (pw, pw)),
            dimension_numbers=("NCHW", "OIHW", "NCHW"))
    return p.reshape(B, K, oh * ow), oh, ow


def patch_embed_forward(x, w, b, *, patch_size=16, stride=16, padding=0,
                        compute_dtype=jnp.bfloat16, out_dtype=None):
    """PatchEmbed forward.

    x: (B, in_chans, H, W)
    w: (embed_dim, in_chans, kh, kw)   (torch Conv2d weight layout)
    b: (embed_dim,)
    returns: (B, embed_dim, H_out, W_out), dtype = out_dtype (default: x.dtype)
    """
    patch_size = _to_2tuple(patch_size)
    stride = _to_2tuple(stride)
    padding = _to_2tuple(padding)
    out_dtype = x.dtype if out_dtype is None else out_dtype

    B = x.shape[0]
    N = w.shape[0]                                   # embed_dim
    K = w.shape[1] * w.shape[2] * w.shape[3]         # C * kh * kw

    # Single patch-extraction pass, done in the compute dtype (no f32 upcast).
    xT, oh, ow = _extract_patches_T(x.astype(compute_dtype), patch_size, stride, padding)
    L = oh * ow

    w2 = w.reshape(N, K).astype(compute_dtype)       # torch layout used as-is
    b2 = b.reshape(N, 1).astype(jnp.float32)         # added after f32 accumulation

    # Split embed_dim only when B == 1 so v7x still gets >= 2 parallel grid steps.
    n_tiles = 2 if (B == 1 and N % 16 == 0) else 1
    tn = N // n_tiles

    # Batch tile: group images per grid step to amortize per-step overhead while
    # keeping >= 2 grid steps (two v7x TensorCores) and fitting the VMEM budget.
    csz = jnp.dtype(compute_dtype).itemsize
    osz = jnp.dtype(out_dtype).itemsize
    x_img = K * L * csz
    o_img = tn * L * osz
    wb_bytes = tn * K * csz + tn * 4
    vmem_cap = 40 << 20                               # well under v7x's 64 MiB VMEM
    bt = 1
    for cand in range(1, B + 1):
        if B % cand != 0:
            continue
        if (B // cand) * n_tiles < 2 and B * n_tiles >= 2:
            continue                                  # don't collapse below 2 steps
        if 2 * (cand * (x_img + o_img) + wb_bytes) > vmem_cap:
            continue
        bt = cand
    # TODO(synk): tile L (padded to a multiple of 128) for very large images whose
    # per-image (K, L) block would not fit the VMEM budget; not needed here.

    block_bytes = bt * (x_img + o_img) + wb_bytes
    vmem_limit = int(min(max(2 * block_bytes + (4 << 20), 16 << 20), 64 << 20))

    out = pl.pallas_call(
        _patch_embed_kernel,
        out_shape=jax.ShapeDtypeStruct((B, N, L), out_dtype),
        grid_spec=pltpu.PrefetchScalarGridSpec(
            num_scalar_prefetch=0,
            grid=(B // bt, n_tiles),
            in_specs=[
                pl.BlockSpec((bt, K, L), lambda bi, ni: (bi, 0, 0)),
                pl.BlockSpec((tn, K), lambda bi, ni: (ni, 0)),
                pl.BlockSpec((tn, 1), lambda bi, ni: (ni, 0)),
            ],
            out_specs=pl.BlockSpec((bt, tn, L), lambda bi, ni: (bi, ni, 0)),
        ),
        compiler_params=pltpu.CompilerParams(
            dimension_semantics=("parallel", "parallel"),
            vmem_limit_bytes=vmem_limit),
    )(xT, w2, b2)

    # norm_layer=None -> nn.Identity(); NCHW view is a free reshape (no transpose).
    return out.reshape(B, N, oh, ow)


# ----------------------------------------------------------------------------
# Pure-JAX reference (nn.Conv2d) for correctness check
# ----------------------------------------------------------------------------
def patch_embed_reference(x, w, b, patch_size, stride, padding):
    sh, sw = _to_2tuple(stride)
    ph, pw = _to_2tuple(padding)
    y = lax.conv_general_dilated(
        x, w, window_strides=(sh, sw), padding=((ph, ph), (pw, pw)),
        dimension_numbers=("NCHW", "OIHW", "NCHW"))
    return y + b[None, :, None, None]


# ----------------------------------------------------------------------------
# Main
# ----------------------------------------------------------------------------
if __name__ == "__main__":
    def run_case(key, B, C, H, W, patch, stride, pad, embed):
        k0, k1, k2 = jax.random.split(key, 3)
        kh, kw = _to_2tuple(patch)
        K = C * kh * kw
        x = jax.random.normal(k0, (B, C, H, W), jnp.float32)
        w = jax.random.normal(k1, (embed, C, kh, kw), jnp.float32) / np.sqrt(K)
        b = 0.1 * jax.random.normal(k2, (embed,), jnp.float32)

        fwd = jax.jit(functools.partial(
            patch_embed_forward, patch_size=patch, stride=stride, padding=pad))
        out = jax.block_until_ready(fwd(x, w, b))

        sh, sw = _to_2tuple(stride)
        ph, pw = _to_2tuple(pad)
        oh = (H + 2 * ph - kh) // sh + 1
        ow = (W + 2 * pw - kw) // sw + 1
        assert out.shape == (B, embed, oh, ow), out.shape
        assert out.dtype == jnp.float32

        ref = patch_embed_reference(x, w, b, (kh, kw), stride, pad)
        # bf16 operands with f32 accumulation -> slightly looser tolerance.
        np.testing.assert_allclose(np.asarray(out), np.asarray(ref),
                                   rtol=2e-2, atol=2e-2)

    keys = jax.random.split(jax.random.PRNGKey(0), 2)
    # Canonical non-overlapping PatchEmbed (reshape fast path).
    run_case(keys[0], B=2, C=3, H=64, W=64, patch=8, stride=8, pad=0, embed=128)
    # Overlapping / padded stage (conv_general_dilated_patches path).
    run_case(keys[1], B=2, C=8, H=16, W=16, patch=3, stride=2, pad=1, embed=128)
    print("KERNEL_OK")
</pallas_src>

<mosaic_0001>
module attributes {stable_mosaic.version = 11 : i64} {
  func.func @_patch_embed_kernel(%arg0: i32, %arg1: i32, %arg2: memref<1x192x64xbf16, #tpu.memory_space<vmem>>, %arg3: memref<128x192xbf16, #tpu.memory_space<vmem>>, %arg4: memref<128x1xf32, #tpu.memory_space<vmem>>, %arg5: memref<1x128x64xf32, #tpu.memory_space<vmem>>) attributes {dimension_semantics = [#tpu.dimension_semantics<parallel>, #tpu.dimension_semantics<parallel>], iteration_bounds = array<i64: 2, 1>, scalar_prefetch = 0 : i64, scratch_operands = 0 : i64, tpu.core_type = #tpu.core_type<tc>, window_params = [{transform_indices = @transform_0, window_bounds = array<i64: 1, 192, 64>}, {transform_indices = @transform_1, window_bounds = array<i64: 128, 192>}, {transform_indices = @transform_2, window_bounds = array<i64: 128, 1>}, {transform_indices = @transform_3, window_bounds = array<i64: 1, 128, 64>}]} {
    %c0 = arith.constant 0 : index
    %c0_0 = arith.constant 0 : index
    %0 = vector.load %arg3[%c0, %c0_0] : memref<128x192xbf16, #tpu.memory_space<vmem>>, vector<128x192xbf16>
    %c0_1 = arith.constant 0 : index
    %c0_2 = arith.constant 0 : index
    %1 = vector.load %arg4[%c0_1, %c0_2] : memref<128x1xf32, #tpu.memory_space<vmem>>, vector<128x1xf32>
    %c0_3 = arith.constant 0 : index
    %c0_4 = arith.constant 0 : index
    %c0_5 = arith.constant 0 : index
    %2 = vector.load %arg2[%c0_3, %c0_4, %c0_5] : memref<1x192x64xbf16, #tpu.memory_space<vmem>>, vector<1x192x64xbf16>
    %3 = vector.shape_cast %2 : vector<1x192x64xbf16> to vector<192x64xbf16>
    %cst = arith.constant dense<0.000000e+00> : vector<128x64xf32>
    %4 = tpu.matmul %0, %3, %cst {dimension_numbers = #tpu.dot_dimension_numbers<[1], [0], [0], [1], [0, 0, 1, 1], [], []>} : vector<128x192xbf16>, vector<192x64xbf16>, vector<128x64xf32> -> vector<128x64xf32>
    %5 = vector.broadcast %1 : vector<128x1xf32> to vector<128x64xf32>
    %6 = arith.addf %4, %5 : vector<128x64xf32>
    %c0_6 = arith.constant 0 : index
    %c0_7 = arith.constant 0 : index
    %c0_8 = arith.constant 0 : index
    %7 = vector.load %arg5[%c0_6, %c0_7, %c0_8] : memref<1x128x64xf32, #tpu.memory_space<vmem>>, vector<1x128x64xf32>
    %8 = vector.shape_cast %7 : vector<1x128x64xf32> to vector<128x64xf32>
    %9 = vector.shape_cast %6 : vector<128x64xf32> to vector<1x128x64xf32>
    tpu.vector_store %arg5[%c0_6, %c0_7, %c0_8], %9 {strides = array<i32>} : memref<1x128x64xf32, #tpu.memory_space<vmem>>, vector<1x128x64xf32>,
    return
  }
  func.func @transform_0(%arg0: i32, %arg1: i32) -> (i32, i32, i32) {
    %c0_i32 = arith.constant 0 : i32
    %c0_i32_0 = arith.constant 0 : i32
    %c0_i32_1 = arith.constant 0 : i32
    return %arg0, %c0_i32, %c0_i32_0 : i32, i32, i32
  }
  func.func @transform_1(%arg0: i32, %arg1: i32) -> (i32, i32) {
    %c0_i32 = arith.constant 0 : i32
    %c0_i32_0 = arith.constant 0 : i32
    return %arg1, %c0_i32 : i32, i32
  }
  func.func @transform_2(%arg0: i32, %arg1: i32) -> (i32, i32) {
    %c0_i32 = arith.constant 0 : i32
    %c0_i32_0 = arith.constant 0 : i32
    return %arg1, %c0_i32 : i32, i32
  }
  func.func @transform_3(%arg0: i32, %arg1: i32) -> (i32, i32, i32) {
    %c0_i32 = arith.constant 0 : i32
    %c0_i32_0 = arith.constant 0 : i32
    return %arg0, %arg1, %c0_i32 : i32, i32, i32
  }
}

</mosaic_0001>

<llo_original>
// kernel: patch_embed_forward.1
$region0: #{patch_embed_forward.1}
  #allocation0 [shape = 'u32[]', space=smem, size = 0x4, offset = 0x4, fixed_abs, tag = 'smem constant byte address 0x4 - core index']
  #allocation1 [shape = 'u32[144,128]{1,0:T(1,128)}', space=vmem, size = 0x12000, scoped, tag = 'internal scratch']
  %s0 = inlined_call_operand.vmem [shape: bf16[2,192,64], index: 0, kind: input, shape index: {}]
  %s1 = inlined_call_operand.vmem [shape: bf16[128,192], index: 1, kind: input, shape index: {}]
  %s2 = inlined_call_operand.vmem [shape: f32[128,1], index: 2, kind: input, shape index: {}]
  %s3 = inlined_call_operand.vmem [shape: f32[2,128,64], index: 3, kind: output, shape index: {}]
  %s4 = sld [smem:[#allocation0]]
  $region45: #{patch_embed_forward.1} parent=0
    _
  %s6 = ssub.s32 1, %s4
  %s7 = scalar_select 0, %s6, %s4
  loop: start=0, step=1, limit=4
  $region2: #{patch_embed_forward.1} parent=0 // loop_pre_header
    _
  $region3: #{patch_embed_forward.1} parent=0 // loop_header
    %s9 = sphi 0, %s13
    %p10 = scmp.ge.s32.totalorder %s9, 4
    %s16 = sphi 0, %s28
    %s17 = sphi 0, %s24
    %s18 = sphi 0, %s16
    %s19 = sphi 0, %s17
    %s20 = sphi 0, %s18
    %s21 = sphi 0, %s19
    %s31 = sphi 0, %s33
    %s34 = sphi 0, %s31
    %s35 = sphi 0, %s34
    %s51 = sphi 0, %s35
    %s57 = sphi 0, %s59
    %s60 = sphi 0, %s57
    %s61 = sphi 0, %s60
    %s77 = sphi 0, %s61
    %s83 = sphi 0, %s85
    %s86 = sphi 0, %s83
    %s87 = sphi 0, %s86
    %s103 = sphi 0, %s87
    %s111 = sphi 0, %s113
    %s114 = sphi 0, %s111
    %s115 = sphi 0, %s114
    %s131 = sphi 0, %s115
  $region4: #{patch_embed_forward.1} parent=0 // loop_header_branch
    %12 = sbr.rel (%p10) target = $region8
  $region5: #{patch_embed_forward.1} parent=0 // loop_body
    %s14 = ssub.s32 %s9, 1
    %s15 = ssub.s32 %s9, 2
    %s22 = sadd.s32 1, %s17
    %p23 = scmp.ge.s32.totalorder %s22, 1
    %s24 = scalar_select %p23, 0, %s22
    %s25 = sadd.s32 1, %s16
    %s26 = scalar_select %p23, %s25, %s16
    %p27 = scmp.ge.s32.totalorder %s26, 2
    %s28 = scalar_select %p27, 0, %s26
    %s29 = ssub.s32 %s16, %s28
    %p30 = scmp.eq.s32.totalorder %s29, 0
    %s32 = sadd.s32 %s31, 1
    %s33 = scalar_select %p30, %s31, %s32
    %p36 = pneg %p30
    %p37 = scmp.eq.s32.totalorder %s9, 1
    %p38 = por %p36, %p37
    %p39 = scmp.ne.s32.totalorder %s31, %s34
    %p40 = scmp.eq.s32.totalorder %s9, 0
    %p41 = por %p39, %p40
    %p42 = scmp.ne.s32.totalorder %s31, %s34
    %p43 = scmp.eq.s32.totalorder %s14, 1
    %p44 = por %p42, %p43
    %p45 = scmp.ne.s32.totalorder %s34, %s35
    %p46 = scmp.eq.s32.totalorder %s14, 0
    %p47 = por %p45, %p46
    %p48 = scmp.ne.s32.totalorder %s34, %s35
    %p49 = scmp.eq.s32.totalorder %s15, 1
    %p50 = por %p48, %p49
    %p52 = scmp.ne.s32.totalorder %s35, %s51
    %p53 = scmp.eq.s32.totalorder %s15, 0
    %p54 = por %p52, %p53
    %s55 = ssub.s32 %s17, %s24
    %p56 = scmp.eq.s32.totalorder %s55, 0
    %s58 = sadd.s32 %s57, 1
    %s59 = scalar_select %p56, %s57, %s58
    %p62 = pneg %p56
    %p63 = scmp.eq.s32.totalorder %s9, 1
    %p64 = por %p62, %p63
    %p65 = scmp.ne.s32.totalorder %s57, %s60
    %p66 = scmp.eq.s32.totalorder %s9, 0
    %p67 = por %p65, %p66
    %p68 = scmp.ne.s32.totalorder %s57, %s60
    %p69 = scmp.eq.s32.totalorder %s14, 1
    %p70 = por %p68, %p69
    %p71 = scmp.ne.s32.totalorder %s60, %s61
    %p72 = scmp.eq.s32.totalorder %s14, 0
    %p73 = por %p71, %p72
    %p74 = scmp.ne.s32.totalorder %s60, %s61
    %p75 = scmp.eq.s32.totalorder %s15, 1
    %p76 = por %p74, %p75
    %p78 = scmp.ne.s32.totalorder %s61, %s77
    %p79 = scmp.eq.s32.totalorder %s15, 0
    %p80 = por %p78, %p79
    %s81 = ssub.s32 %s17, %s24
    %p82 = scmp.eq.s32.totalorder %s81, 0
    %s84 = sadd.s32 %s83, 1
    %s85 = scalar_select %p82, %s83, %s84
    %p88 = pneg %p82
    %p89 = scmp.eq.s32.totalorder %s9, 1
    %p90 = por %p88, %p89
    %p91 = scmp.ne.s32.totalorder %s83, %s86
    %p92 = scmp.eq.s32.totalorder %s9, 0
    %p93 = por %p91, %p92
    %p94 = scmp.ne.s32.totalorder %s83, %s86
    %p95 = scmp.eq.s32.totalorder %s14, 1
    %p96 = por %p94, %p95
    %p97 = scmp.ne.s32.totalorder %s86, %s87
    %p98 = scmp.eq.s32.totalorder %s14, 0
    %p99 = por %p97, %p98
    %p100 = scmp.ne.s32.totalorder %s86, %s87
    %p101 = scmp.eq.s32.totalorder %s15, 1
    %p102 = por %p100, %p101
    %p104 = scmp.ne.s32.totalorder %s87, %s103
    %p105 = scmp.eq.s32.totalorder %s15, 0
    %p106 = por %p104, %p105
    %s107 = ssub.s32 %s16, %s28
    %s108 = ssub.s32 %s17, %s24
    %s109 = sor.u32 %s107, %s108
    %p110 = scmp.eq.s32.totalorder %s109, 0
    %s112 = sadd.s32 %s111, 1
    %s113 = scalar_select %p110, %s111, %s112
    %p116 = pneg %p110
    %p117 = scmp.eq.s32.totalorder %s9, 1
    %p118 = por %p116, %p117
    %p119 = scmp.ne.s32.totalorder %s111, %s114
    %p120 = scmp.eq.s32.totalorder %s9, 0
    %p121 = por %p119, %p120
    %p122 = scmp.ne.s32.totalorder %s111, %s114
    %p123 = scmp.eq.s32.totalorder %s14, 1
    %p124 = por %p122, %p123
    %p125 = scmp.ne.s32.totalorder %s114, %s115
    %p126 = scmp.eq.s32.totalorder %s14, 0
    %p127 = por %p125, %p126
    %p128 = scmp.ne.s32.totalorder %s114, %s115
    %p129 = scmp.eq.s32.totalorder %s15, 1
    %p130 = por %p128, %p129
    %p132 = scmp.ne.s32.totalorder %s115, %s131
    %p133 = scmp.eq.s32.totalorder %s15, 0
    %p134 = por %p132, %p133
    %p135 = scmp.le.s32.totalorder 1, %s9
    %p136 = scmp.lt.s32.totalorder %s9, 3
    %p137 = pnand %p135, %p136
    %p138 = pneg %p137
    // Predicated region
    $region9: #{patch_embed_forward.1} parent=5 // pred_check
      _
    $region10: #{patch_embed_forward.1} parent=5 // pred_check_branch
      %140 = sbr.rel (%p137) target = $region12
    $region11: #{patch_embed_forward.1} parent=5 // pred_region
      %s141 = ssub.s32 %s9, 1
      // Predicated region
      $region13: #{patch_embed_forward.1} parent=11 // pred_check
        %p142 = pneg %p73
      $region14: #{patch_embed_forward.1} parent=11 // pred_check_branch
        %144 = sbr.rel (%p142) target = $region16
      $region15: #{patch_embed_forward.1} parent=11 // pred_region
        %s145 = smul.u32 16, %s19
        %p146 = scmp.lt.s32.totalorder %s145, 15
        %s147 = scalar_select %p146, %s145, 15
        %s148 = smul.addr %s147, 2
        %s149 = smul.addr %s148, 4
        %s150 = scalar_lea.vmem %s1, %s149
        %s151 = smul.u32 16, %s19
      $region16: #{patch_embed_forward.1} parent=11 // pred_fallthru
        _
      // Predicated region
      $region17: #{patch_embed_forward.1} parent=11 // pred_check
        %p152 = pneg %p99
      $region18: #{patch_embed_forward.1} parent=11 // pred_check_branch
        %154 = sbr.rel (%p152) target = $region20
      $region19: #{patch_embed_forward.1} parent=11 // pred_region
        %s155 = smul.u32 16, %s19
        %p156 = scmp.lt.s32.totalorder %s155, 15
        %s157 = scalar_select %p156, %s155, 15
        %s158 = smul.addr %s157, 8
        %s159 = scalar_lea.vmem %s2, %s158
        %s160 = smul.u32 16, %s19
      $region20: #{patch_embed_forward.1} parent=11 // pred_fallthru
        _
    $region12: #{patch_embed_forward.1} parent=5 // pred_fallthru
      _
    %p161 = scmp.lt.s32.totalorder %s9, 2
    // Predicated region
    $region21: #{patch_embed_forward.1} parent=5 // pred_check
      %p162 = pneg %p161
    $region22: #{patch_embed_forward.1} parent=5 // pred_check_branch
      %164 = sbr.rel (%p162) target = $region24
    $region23: #{patch_embed_forward.1} parent=5 // pred_region
      // Predicated region
      $region25: #{patch_embed_forward.1} parent=23 // pred_check
        %p165 = pneg %p41
      $region26: #{patch_embed_forward.1} parent=23 // pred_check_branch
        %167 = sbr.rel (%p165) target = $region28
      $region27: #{patch_embed_forward.1} parent=23 // pred_region
        %p168 = scmp.lt.s32.totalorder %s16, 1
        %s169 = scalar_select %p168, %s16, 1
        %s170 = smul.addr %s169, 24
        %s171 = smul.addr %s170, 4
        %s172 = scalar_lea.vmem %s0, %s171
      $region28: #{patch_embed_forward.1} parent=23 // pred_fallthru
        _
    $region24: #{patch_embed_forward.1} parent=5 // pred_fallthru
      _
    %p173 = scmp.le.s32.totalorder 1, %s9
    %p174 = scmp.lt.s32.totalorder %s9, 3
    %p175 = pnand %p173, %p174
    %p176 = pneg %p175
    // Predicated region
    $region29: #{patch_embed_forward.1} parent=5 // pred_check
      _
    $region30: #{patch_embed_forward.1} parent=5 // pred_check_branch
      %178 = sbr.rel (%p175) target = $region32
    $region31: #{patch_embed_forward.1} parent=5 // pred_region
      %s179 = ssub.s32 %s9, 1
      %p180 = scmp.lt.s32.totalorder %s18, 1
      %s181 = scalar_select %p180, %s18, 1
      %s182 = smul.addr %s181, 24
      %s183 = smul.addr %s182, 4
      %s184 = scalar_lea.vmem %s0, %s183
      %p185 = pneg %p47
      %p186 = pneg %p44
      %s187 = smul.u32 16, %s19
      %p188 = scmp.lt.s32.totalorder %s187, 15
      %s189 = scalar_select %p188, %s187, 15
      %s190 = smul.addr %s189, 2
      %s191 = smul.addr %s190, 4
      %s192 = scalar_lea.vmem %s1, %s191
      %p193 = pneg %p73
      %p194 = pneg %p70
      %s195 = smul.u32 16, %s19
      %p196 = scmp.lt.s32.totalorder %s195, 15
      %s197 = scalar_select %p196, %s195, 15
      %s198 = smul.addr %s197, 8
      %s199 = scalar_lea.vmem %s2, %s198
      %p200 = pneg %p99
      %p201 = pneg %p96
      %p202 = pneg %p127
      %p203 = pneg %p124
      %s204 = smul.u32 16, %s19
      %p205 = scmp.lt.s32.totalorder %s18, 1
      %s206 = scalar_select %p205, %s18, 1
      %p207 = scmp.lt.s32.totalorder %s204, 15
      %s208 = scalar_select %p207, %s204, 15
      %s209 = smul.addr %s206, 16
      %s210 = sadd.s32 %s208, %s209
      %s211 = smul.addr %s210, 8
      %s212 = scalar_lea.vmem %s3, %s211
      %p213 = scmp.lt.s32.totalorder %s18, 1
      %s214 = scalar_select %p213, %s18, 1
      %s215 = smul.addr %s214, 24
      %s216 = smul.addr %s215, 4
      %s217 = scalar_lea.vmem %s0, %s216
      %s218 = smul.u32 16, %s19
      %p219 = scmp.lt.s32.totalorder %s218, 15
      %s220 = scalar_select %p219, %s218, 15
      %s221 = smul.addr %s220, 2
      %s222 = smul.addr %s221, 4
      %s223 = scalar_lea.vmem %s1, %s222
      %s224 = smul.u32 16, %s19
      %s225 = smul.u32 16, %s19
      %p226 = scmp.lt.s32.totalorder %s225, 15
      %s227 = scalar_select %p226, %s225, 15
      %s228 = smul.addr %s227, 8
      %s229 = scalar_lea.vmem %s2, %s228
      %s230 = smul.u32 16, %s19
      %s231 = smul.u32 16, %s19
      %p232 = scmp.lt.s32.totalorder %s18, 1
      %s233 = scalar_select %p232, %s18, 1
      %p234 = scmp.lt.s32.totalorder %s231, 15
      %s235 = scalar_select %p234, %s231, 15
      %s236 = smul.addr %s233, 16
      %s237 = sadd.s32 %s235, %s236
      %s238 = smul.addr %s237, 8
      %s239 = scalar_lea.vmem %s3, %s238
      %s240 = smul.u32 16, %s19
      %v242 = vld [vmem:[%s223] sm:$0xff]
      %v243 = vld [vmem:[%s223 + $0x8] sm:$0xff]
      %v244 = vld [vmem:[%s223 + $0x10] sm:$0xff]
      %v245 = vld [vmem:[%s223 + $0x18] sm:$0xff]
      %v246 = vld [vmem:[%s223 + $0x20] sm:$0xff]
      %v247 = vld [vmem:[%s223 + $0x28] sm:$0xff]
      %v248 = vld [vmem:[%s223 + $0x30] sm:$0xff]
      %v249 = vld [vmem:[%s223 + $0x38] sm:$0xff]
      %v250 = vld [vmem:[%s223 + $0x40] sm:$0xff]
      %v251 = vld [vmem:[%s223 + $0x48] sm:$0xff]
      %v252 = vld [vmem:[%s223 + $0x50] sm:$0xff]
      %v253 = vld [vmem:[%s223 + $0x58] sm:$0xff]
      %v254 = vld [vmem:[%s223 + $0x60] sm:$0xff]
      %v255 = vld [vmem:[%s223 + $0x68] sm:$0xff]
      %v256 = vld [vmem:[%s223 + $0x70] sm:$0xff]
      %v257 = vld [vmem:[%s223 + $0x78] sm:$0xff]
      %v258 = vld [vmem:[%s229] sm:$0xff]
      %v259 = vld [vmem:[%s229 + $0x8] sm:$0xff]
      %v260 = vld [vmem:[%s229 + $0x10] sm:$0xff]
      %v261 = vld [vmem:[%s229 + $0x18] sm:$0xff]
      %v262 = vld [vmem:[%s229 + $0x20] sm:$0xff]
      %v263 = vld [vmem:[%s229 + $0x28] sm:$0xff]
      %v264 = vld [vmem:[%s229 + $0x30] sm:$0xff]
      %v265 = vld [vmem:[%s229 + $0x38] sm:$0xff]
      %v266 = vld [vmem:[%s229 + $0x40] sm:$0xff]
      %v267 = vld [vmem:[%s229 + $0x48] sm:$0xff]
      %v268 = vld [vmem:[%s229 + $0x50] sm:$0xff]
      %v269 = vld [vmem:[%s229 + $0x58] sm:$0xff]
      %v270 = vld [vmem:[%s229 + $0x60] sm:$0xff]
      %v271 = vld [vmem:[%s229 + $0x68] sm:$0xff]
      %v272 = vld [vmem:[%s229 + $0x70] sm:$0xff]
      %v273 = vld [vmem:[%s229 + $0x78] sm:$0xff]
      %v274 = vld [vmem:[%s217] sm:$0xf]
      %v275 = vld [vmem:[%s217 + $0x4] sm:$0xf]
      %v276 = vld [vmem:[%s217 + $0x8] sm:$0xf]
      %v277 = vld [vmem:[%s217 + $0xc] sm:$0xf]
      %v278 = vld [vmem:[%s217 + $0x10] sm:$0xf]
      %v279 = vld [vmem:[%s217 + $0x14] sm:$0xf]
      %v280 = vld [vmem:[%s217 + $0x18] sm:$0xf]
      %v281 = vld [vmem:[%s217 + $0x1c] sm:$0xf]
      %v282 = vld [vmem:[%s217 + $0x20] sm:$0xf]
      %v283 = vld [vmem:[%s217 + $0x24] sm:$0xf]
      %v284 = vld [vmem:[%s217 + $0x28] sm:$0xf]
      %v285 = vld [vmem:[%s217 + $0x2c] sm:$0xf]
      %v286 = vld [vmem:[%s217 + $0x30] sm:$0xf]
      %v287 = vld [vmem:[%s217 + $0x34] sm:$0xf]
      %v288 = vld [vmem:[%s217 + $0x38] sm:$0xf]
      %v289 = vld [vmem:[%s217 + $0x3c] sm:$0xf]
      %v290 = vld [vmem:[%s217 + $0x40] sm:$0xf]
      %v291 = vld [vmem:[%s217 + $0x44] sm:$0xf]
      %v292 = vld [vmem:[%s217 + $0x48] sm:$0xf]
      %v293 = vld [vmem:[%s217 + $0x4c] sm:$0xf]
      %v294 = vld [vmem:[%s217 + $0x50] sm:$0xf]
      %v295 = vld [vmem:[%s217 + $0x54] sm:$0xf]
      %v296 = vld [vmem:[%s217 + $0x58] sm:$0xf]
      %v297 = vld [vmem:[%s217 + $0x5c] sm:$0xf]
      %299 = vset.pattern.permute.xlu0 0
      %300 = vperm.xlu0 %299, %v258
      %v301 = vpop.permute.xlu0 %300
      %304 = vset.pattern.permute.xlu0 0
      %305 = vperm.xlu0 %304, %v259
      %v306 = vpop.permute.xlu0 %305
      %309 = vset.pattern.permute.xlu0 0
      %310 = vperm.xlu0 %309, %v260
      %v311 = vpop.permute.xlu0 %310
      %314 = vset.pattern.permute.xlu0 0
      %315 = vperm.xlu0 %314, %v261
      %v316 = vpop.permute.xlu0 %315
      %319 = vset.pattern.permute.xlu0 0
      %320 = vperm.xlu0 %319, %v262
      %v321 = vpop.permute.xlu0 %320
      %324 = vset.pattern.permute.xlu0 0
      %325 = vperm.xlu0 %324, %v263
      %v326 = vpop.permute.xlu0 %325
      %329 = vset.pattern.permute.xlu0 0
      %330 = vperm.xlu0 %329, %v264
      %v331 = vpop.permute.xlu0 %330
      %334 = vset.pattern.permute.xlu0 0
      %335 = vperm.xlu0 %334, %v265
      %v336 = vpop.permute.xlu0 %335
      %339 = vset.pattern.permute.xlu0 0
      %340 = vperm.xlu0 %339, %v266
      %v341 = vpop.permute.xlu0 %340
      %344 = vset.pattern.permute.xlu0 0
      %345 = vperm.xlu0 %344, %v267
      %v346 = vpop.permute.xlu0 %345
      %349 = vset.pattern.permute.xlu0 0
      %350 = vperm.xlu0 %349, %v268
      %v351 = vpop.permute.xlu0 %350
      %354 = vset.pattern.permute.xlu0 0
      %355 = vperm.xlu0 %354, %v269
      %v356 = vpop.permute.xlu0 %355
      %359 = vset.pattern.permute.xlu0 0
      %360 = vperm.xlu0 %359, %v270
      %v361 = vpop.permute.xlu0 %360
      %364 = vset.pattern.permute.xlu0 0
      %365 = vperm.xlu0 %364, %v271
      %v366 = vpop.permute.xlu0 %365
      %369 = vset.pattern.permute.xlu0 0
      %370 = vperm.xlu0 %369, %v272
      %v371 = vpop.permute.xlu0 %370
      %374 = vset.pattern.permute.xlu0 0
      %375 = vperm.xlu0 %374, %v273
      %v376 = vpop.permute.xlu0 %375
      %v394 = vunpack.c.l.b16 %v242
      %v395 = vunpack.c.h.b16 %v242
      %v396 = vunpack.c.l.b16 %v243
      %v397 = vunpack.c.h.b16 %v243
      %v398 = vunpack.c.l.b16 %v244
      %v399 = vunpack.c.h.b16 %v244
      %v400 = vunpack.c.l.b16 %v245
      %v401 = vunpack.c.h.b16 %v245
      %v402 = vunpack.c.l.b16 %v246
      %v403 = vunpack.c.h.b16 %v246
      %v404 = vunpack.c.l.b16 %v247
      %v405 = vunpack.c.h.b16 %v247
      %v406 = vunpack.c.l.b16 %v248
      %v407 = vunpack.c.h.b16 %v248
      %v408 = vunpack.c.l.b16 %v249
      %v409 = vunpack.c.h.b16 %v249
      %v410 = vunpack.c.l.b16 %v250
      %v411 = vunpack.c.h.b16 %v250
      %v412 = vunpack.c.l.b16 %v251
      %v413 = vunpack.c.h.b16 %v251
      %v414 = vunpack.c.l.b16 %v252
      %v415 = vunpack.c.h.b16 %v252
      %v416 = vunpack.c.l.b16 %v253
      %v417 = vunpack.c.h.b16 %v253
      %v418 = vunpack.c.l.b16 %v254
      %v419 = vunpack.c.h.b16 %v254
      %v420 = vunpack.c.l.b16 %v255
      %v421 = vunpack.c.h.b16 %v255
      %v422 = vunpack.c.l.b16 %v256
      %v423 = vunpack.c.h.b16 %v256
      %v424 = vunpack.c.l.b16 %v257
      %v425 = vunpack.c.h.b16 %v257
      %v426 = vpack.c.b16 %v396, %v394
      %v427 = vpack.c.b16 %v397, %v395
      %v428 = vpack.c.b16 %v400, %v398
      %v429 = vpack.c.b16 %v401, %v399
      %v430 = vpack.c.b16 %v404, %v402
      %v431 = vpack.c.b16 %v405, %v403
      %v432 = vpack.c.b16 %v408, %v406
      %v433 = vpack.c.b16 %v409, %v407
      %v434 = vpack.c.b16 %v412, %v410
      %v435 = vpack.c.b16 %v413, %v411
      %v436 = vpack.c.b16 %v416, %v414
      %v437 = vpack.c.b16 %v417, %v415
      %v438 = vpack.c.b16 %v420, %v418
      %v439 = vpack.c.b16 %v421, %v419
      %v440 = vpack.c.b16 %v424, %v422
      %v441 = vpack.c.b16 %v425, %v423
      %v474 = vunpack.c.l.b16 %v274
      %v475 = vunpack.c.l.b16 %v275
      %v476 = vunpack.c.l.b16 %v276
      %v477 = vunpack.c.l.b16 %v277
      %v478 = vunpack.c.l.b16 %v278
      %v479 = vunpack.c.l.b16 %v279
      %v480 = vunpack.c.l.b16 %v280
      %v481 = vunpack.c.l.b16 %v281
      %v482 = vunpack.c.l.b16 %v282
      %v483 = vunpack.c.l.b16 %v283
      %v484 = vunpack.c.l.b16 %v284
      %v485 = vunpack.c.l.b16 %v285
      %v486 = vunpack.c.l.b16 %v286
      %v487 = vunpack.c.l.b16 %v287
      %v488 = vunpack.c.l.b16 %v288
      %v489 = vunpack.c.l.b16 %v289
      %v490 = vunpack.c.l.b16 %v290
      %v491 = vunpack.c.l.b16 %v291
      %v492 = vunpack.c.l.b16 %v292
      %v493 = vunpack.c.l.b16 %v293
      %v494 = vunpack.c.l.b16 %v294
      %v495 = vunpack.c.l.b16 %v295
      %v496 = vunpack.c.l.b16 %v296
      %v497 = vunpack.c.l.b16 %v297
      %v498 = vpack.c.b16 %v475, %v474
      %v499 = vpack.c.b16 %v477, %v476
      %v500 = vpack.c.b16 %v479, %v478
      %v501 = vpack.c.b16 %v481, %v480
      %v502 = vpack.c.b16 %v483, %v482
      %v503 = vpack.c.b16 %v485, %v484
      %v504 = vpack.c.b16 %v487, %v486
      %v505 = vpack.c.b16 %v489, %v488
      %v506 = vpack.c.b16 %v491, %v490
      %v507 = vpack.c.b16 %v493, %v492
      %v508 = vpack.c.b16 %v495, %v494
      %v509 = vpack.c.b16 %v497, %v496
      %vm522 = vcmask 523264
      %v524 = vsel %vm522, %v427, 0
      %v527 = vsel %vm522, %v429, 0
      %v530 = vsel %vm522, %v431, 0
      %v533 = vsel %vm522, %v433, 0
      %v536 = vsel %vm522, %v435, 0
      %v539 = vsel %vm522, %v437, 0
      %v542 = vsel %vm522, %v439, 0
      %v545 = vsel %vm522, %v441, 0
      %547 = vmatprep.subr.bf16.mxu0 0
      %548 = vmatpush1.bf16.msra.mxu0 %v505
      %549 = vmatprep.subr.bf16.mxu0 0
      %550 = vmatpush1.bf16.msra.mxu0 %v504
      %551 = vmatprep.subr.bf16.mxu0 0
      %552 = vmatpush1.bf16.msra.mxu0 %v503
      %553 = vmatprep.subr.bf16.mxu0 0
      %554 = vmatpush1.bf16.msra.mxu0 %v502
      %555 = vmatprep.subr.bf16.mxu0 0
      %556 = vmatpush1.bf16.msra.mxu0 %v501
      %557 = vmatprep.subr.bf16.mxu0 0
      %558 = vmatpush1.bf16.msra.mxu0 %v500
      %559 = vmatprep.subr.bf16.mxu0 0
      %560 = vmatpush1.bf16.msra.mxu0 %v499
      %561 = vmatprep.subr.bf16.mxu0 0
      %562 = vmatpush1.bf16.msra.mxu0 %v498
      %563 = vmatprep.subr.bf16.mxu0 0
      %564 = vmatpush2.bf16.msra.mxu0 0
      %565 = vmatprep.subr.bf16.mxu0 0
      %566 = vmatpush2.bf16.msra.mxu0 0
      %567 = vmatprep.subr.bf16.mxu0 0
      %568 = vmatpush2.bf16.msra.mxu0 0
      %569 = vmatprep.subr.bf16.mxu0 0
      %570 = vmatpush2.bf16.msra.mxu0 0
      %571 = vmatprep.subr.bf16.mxu0 0
      %572 = vmatpush2.bf16.msra.mxu0 %v509
      %573 = vmatprep.subr.bf16.mxu0 0
      %574 = vmatpush2.bf16.msra.mxu0 %v508
      %575 = vmatprep.subr.bf16.mxu0 0
      %576 = vmatpush2.bf16.msra.mxu0 %v507
      %577 = vmatprep.subr.bf16.mxu0 0
      %578 = vmatpush2.bf16.msra.mxu0 %v506
      %579 = vmatprep.mubr.bf16.mxu0 %v524
      %580 = vmatmul.mubr.bf16.gmra.mxu0 %v426
      %v581 = vpop.f32.mrf.mxu0
      %v582 = vadd.f32 %v301, %v581
      %v583 = vpop.f32.mrf.mxu0
      %v584 = vpop.f32.mrf.mxu0
      %v585 = vadd.f32 %v306, %v584
      %v586 = vpop.f32.mrf.mxu0
      %587 = vmatprep.mubr.bf16.mxu0 %v527
      %588 = vmatmul.mubr.bf16.gmra.mxu0 %v428
      %v589 = vpop.f32.mrf.mxu0
      %v590 = vadd.f32 %v311, %v589
      %v591 = vpop.f32.mrf.mxu0
      %v592 = vpop.f32.mrf.mxu0
      %v593 = vadd.f32 %v316, %v592
      %v594 = vpop.f32.mrf.mxu0
      %595 = vmatprep.mubr.bf16.mxu0 %v530
      %596 = vmatmul.mubr.bf16.gmra.mxu0 %v430
      %v597 = vpop.f32.mrf.mxu0
      %v598 = vadd.f32 %v321, %v597
      %v599 = vpop.f32.mrf.mxu0
      %v600 = vpop.f32.mrf.mxu0
      %v601 = vadd.f32 %v326, %v600
      %v602 = vpop.f32.mrf.mxu0
      %603 = vmatprep.mubr.bf16.mxu0 %v533
      %604 = vmatmul.mubr.bf16.gmra.mxu0 %v432
      %v605 = vpop.f32.mrf.mxu0
      %v606 = vadd.f32 %v331, %v605
      %v607 = vpop.f32.mrf.mxu0
      %v608 = vpop.f32.mrf.mxu0
      %v609 = vadd.f32 %v336, %v608
      %v610 = vpop.f32.mrf.mxu0
      %611 = vmatprep.mubr.bf16.mxu0 %v536
      %612 = vmatmul.mubr.bf16.gmra.mxu0 %v434
      %v613 = vpop.f32.mrf.mxu0
      %v614 = vadd.f32 %v341, %v613
      %v615 = vpop.f32.mrf.mxu0
      %v616 = vpop.f32.mrf.mxu0
      %v617 = vadd.f32 %v346, %v616
      %v618 = vpop.f32.mrf.mxu0
      %619 = vmatprep.mubr.bf16.mxu0 %v539
      %620 = vmatmul.mubr.bf16.gmra.mxu0 %v436
      %v621 = vpop.f32.mrf.mxu0
      %v622 = vadd.f32 %v351, %v621
      %v623 = vpop.f32.mrf.mxu0
      %v624 = vpop.f32.mrf.mxu0
      %v625 = vadd.f32 %v356, %v624
      %v626 = vpop.f32.mrf.mxu0
      %627 = vmatprep.mubr.bf16.mxu0 %v542
      %628 = vmatmul.mubr.bf16.gmra.mxu0 %v438
      %v629 = vpop.f32.mrf.mxu0
      %v630 = vadd.f32 %v361, %v629
      %v631 = vpop.f32.mrf.mxu0
      %v632 = vpop.f32.mrf.mxu0
      %v633 = vadd.f32 %v366, %v632
      %v634 = vpop.f32.mrf.mxu0
      %635 = vmatprep.mubr.bf16.mxu0 %v545
      %636 = vmatmul.mubr.bf16.gmra.mxu0 %v440
      %v637 = vpop.f32.mrf.mxu0
      %v638 = vadd.f32 %v371, %v637
      %v639 = vpop.f32.mrf.mxu0
      %v640 = vpop.f32.mrf.mxu0
      %v641 = vadd.f32 %v376, %v640
      %v642 = vpop.f32.mrf.mxu0
      %643 = vdwg.mxu0
      %644 = vst.msk [vmem:[%s239] sm:$0xff] %vm522, %v582
      %645 = vst.msk [vmem:[%s239 + $0x8] sm:$0xff] %vm522, %v585
      %646 = vst.msk [vmem:[%s239 + $0x10] sm:$0xff] %vm522, %v590
      %647 = vst.msk [vmem:[%s239 + $0x18] sm:$0xff] %vm522, %v593
      %648 = vst.msk [vmem:[%s239 + $0x20] sm:$0xff] %vm522, %v598
      %649 = vst.msk [vmem:[%s239 + $0x28] sm:$0xff] %vm522, %v601
      %650 = vst.msk [vmem:[%s239 + $0x30] sm:$0xff] %vm522, %v606
      %651 = vst.msk [vmem:[%s239 + $0x38] sm:$0xff] %vm522, %v609
      %652 = vst.msk [vmem:[%s239 + $0x40] sm:$0xff] %vm522, %v614
      %653 = vst.msk [vmem:[%s239 + $0x48] sm:$0xff] %vm522, %v617
      %654 = vst.msk [vmem:[%s239 + $0x50] sm:$0xff] %vm522, %v622
      %655 = vst.msk [vmem:[%s239 + $0x58] sm:$0xff] %vm522, %v625
      %656 = vst.msk [vmem:[%s239 + $0x60] sm:$0xff] %vm522, %v630
      %657 = vst.msk [vmem:[%s239 + $0x68] sm:$0xff] %vm522, %v633
      %658 = vst.msk [vmem:[%s239 + $0x70] sm:$0xff] %vm522, %v638
      %659 = vst.msk [vmem:[%s239 + $0x78] sm:$0xff] %vm522, %v641
      %s660 = smul.u32 16, %s19
      %p661 = scmp.lt.s32.totalorder %s18, 1
      %s662 = scalar_select %p661, %s18, 1
      %p663 = scmp.lt.s32.totalorder %s660, 15
      %s664 = scalar_select %p663, %s660, 15
      %s665 = smul.addr %s662, 16
      %s666 = sadd.s32 %s664, %s665
      %s667 = smul.addr %s666, 8
      %s668 = scalar_lea.vmem %s3, %s667
      // Predicated region
      $region33: #{patch_embed_forward.1} parent=31 // pred_check
        %p669 = pneg %p124
      $region34: #{patch_embed_forward.1} parent=31 // pred_check_branch
        %671 = sbr.rel (%p669) target = $region36
      $region35: #{patch_embed_forward.1} parent=31 // pred_region
        %s672 = smul.u32 16, %s19
      $region36: #{patch_embed_forward.1} parent=31 // pred_fallthru
        _
    $region32: #{patch_embed_forward.1} parent=5 // pred_fallthru
      _
    %p673 = scmp.le.s32.totalorder 2, %s9
    // Predicated region
    $region37: #{patch_embed_forward.1} parent=5 // pred_check
      %p674 = pneg %p673
    $region38: #{patch_embed_forward.1} parent=5 // pred_check_branch
      %676 = sbr.rel (%p674) target = $region40
    $region39: #{patch_embed_forward.1} parent=5 // pred_region
      %s677 = ssub.s32 %s9, 2
      // Predicated region
      $region41: #{patch_embed_forward.1} parent=39 // pred_check
        %p678 = pneg %p130
      $region42: #{patch_embed_forward.1} parent=39 // pred_check_branch
        %680 = sbr.rel (%p678) target = $region44
      $region43: #{patch_embed_forward.1} parent=39 // pred_region
        %s681 = smul.u32 16, %s21
        %p682 = scmp.lt.s32.totalorder %s20, 1
        %s683 = scalar_select %p682, %s20, 1
        %p684 = scmp.lt.s32.totalorder %s681, 15
        %s685 = scalar_select %p684, %s681, 15
        %s686 = smul.addr %s683, 16
        %s687 = sadd.s32 %s685, %s686
        %s688 = smul.addr %s687, 8
        %s689 = scalar_lea.vmem %s3, %s688
      $region44: #{patch_embed_forward.1} parent=39 // pred_fallthru
        _
    $region40: #{patch_embed_forward.1} parent=5 // pred_fallthru
      _
  $region6: #{patch_embed_forward.1} parent=0 // loop_footer
    %s13 = sadd.s32 1, %s9
  $region7: #{patch_embed_forward.1} parent=0 // loop_footer_branch
    %8 = sbr.rel target = $region3
  $region8: #{patch_embed_forward.1} parent=0 // loop_exit
    _

</llo_original>
